<compile_context>
chip_gen: v7x
topology: tpu7x:2x2x1
jax: 0.10.0
libtpu: 0.0.40
codegen_flags: <defaults>
</compile_context>

<pallas_src>
from functools import partial

import jax
import jax.numpy as jnp
from jax import lax
from jax.experimental import pallas as pl
from jax.experimental.pallas import tpu as pltpu


LANES = 128  # f32 lane width; lane-dense output slab width


def _round_up(x, m):
    return ((x + m - 1) // m) * m


def cbow_kernel(ids_ref, emb_ref, w1_ref, b1w2_ref, b2_ref, out_ref,
                acc_ref, *, tv):
    k = pl.program_id(1)                      # vocab-tile (reduction) index

    @pl.when(k == 0)
    def _init():
        acc_ref[...] = jnp.zeros_like(acc_ref)

    # Token counts restricted to this vocab tile:
    #   counts[b, v] = #{ s : ids[b, s] == k*tv + v }
    # Tile offset is applied to the (tb, S) ids (cheap) instead of the
    # (tb, tv) iota, and compares accumulate in int32 with one f32 cast
    # before the dot.  S is a small static constant so the Python loop
    # unrolls -- no (S, B, V) one-hot is ever materialized.
    ids = ids_ref[...] - k * tv               # (tb, S) int32
    tb, seq_len = ids.shape
    v_iota = lax.broadcasted_iota(jnp.int32, (tb, tv), 1)
    counts_i = jnp.zeros((tb, tv), jnp.int32)
    for s in range(seq_len):
        counts_i = counts_i + (ids[:, s:s + 1] == v_iota).astype(jnp.int32)
    counts = counts_i.astype(jnp.float32)

    # Partial embedding sum for this vocab tile (MXU), accumulated in VMEM.
    acc_ref[...] += jnp.dot(counts, emb_ref[...],
                            preferred_element_type=jnp.float32)

    @pl.when(k == pl.num_programs(1) - 1)
    def _finalize():
        # w1 is pre-scaled by 1/seq_len on the host, so acc @ w1 == mean @ W1.
        h = jnp.dot(acc_ref[...], w1_ref[...],
                    preferred_element_type=jnp.float32) + b1w2_ref[0:1, :]
        h = jnp.maximum(h, 0.0)                                      # ReLU
        # Linear2 (H -> 1): VPU multiply + lane reduction; avoids an N=1
        # MXU matmul entirely.
        y = jnp.sum(h * b1w2_ref[1:2, :], axis=-1, keepdims=True) + b2_ref[0]
        # Lane-dense store: broadcast the per-row scalar across 128 lanes so
        # the writeback is an unmasked full-tile vst.
        out_ref[...] = jnp.broadcast_to(y, out_ref.shape)


def cbow_forward(ids_sb, emb, w1, b1, w2, b2, *, block_b=256, block_v=2048):
    """Forward pass of CBoWClassifier.

    ids_sb: (S, B) int token ids (torch pad_sequence layout).
    emb:    (V, E) embedding table.
    w1:     (E, H) linear1 weight (transposed vs torch), b1: (1, H).
    w2:     (1, H) linear2 weight (== torch linear2.weight), b2: (1,).
    Returns (B, 1, 1) float32, matching `linear2(...).unsqueeze(2)`.
    """
    S, B = ids_sb.shape
    V, E = emb.shape
    H = w1.shape[1]

    # ---- Tile selection (VMEM + megacore aware) ---------------------------
    # Batch tile: as large as possible, but keep >= 2 batch blocks when B
    # allows so the "parallel" axis can be split across v7x's two TCs.  With
    # B/tb <= 2 the embedding table is re-streamed from HBM at most twice.
    b_pad = _round_up(B, 8)
    tb = min(_round_up(block_b, 8), b_pad)
    if b_pad // tb < 2 and tb >= 16:
        tb = _round_up(tb // 2, 8)
    b_pad = _round_up(b_pad, tb)

    # Vocab tile: big enough to amortize the ~0.35us/step grid overhead, but
    # capped so multi-buffered emb tiles stay well inside v7x's 64 MiB VMEM
    # (<= 4 MiB per buffer; vmem_limit stays at the 32 MiB scoped default).
    max_tv = max(8, ((4 * 1024 * 1024) // (E * 4)) // 8 * 8)
    tv = min(_round_up(block_v, 8), _round_up(V, 8), max_tv)
    v_pad = _round_up(V, tv)

    # ---- Host-side prep ----------------------------------------------------
    ids_bs = ids_sb.T.astype(jnp.int32)                    # (B, S) batch on sublanes
    if b_pad != B:
        ids_bs = jnp.pad(ids_bs, ((0, b_pad - B), (0, 0)))  # pad rows = token 0
    emb_p = jnp.pad(emb, ((0, v_pad - V), (0, 0))) if v_pad != V else emb
    w1_scaled = w1 * jnp.float32(1.0 / S)     # fold the mean's 1/S into w1
    b1w2 = jnp.concatenate([b1.reshape(1, H), w2.reshape(1, H)], axis=0)

    n_b, n_k = b_pad // tb, v_pad // tv
    grid = (n_b, n_k)                         # (parallel batch, vocab reduction)

    emb_map = lambda b, k: (k, 0)
    if n_k > 2:
        # Deeper pipelining only on the operand whose block changes per step.
        emb_spec = pl.BlockSpec((tv, E), emb_map, pipeline_mode=pl.Buffered(3))
    else:
        emb_spec = pl.BlockSpec((tv, E), emb_map)

    out = pl.pallas_call(
        partial(cbow_kernel, tv=tv),
        out_shape=jax.ShapeDtypeStruct((b_pad, LANES), jnp.float32),
        grid_spec=pltpu.PrefetchScalarGridSpec(
            num_scalar_prefetch=0,
            grid=grid,
            in_specs=[
                pl.BlockSpec((tb, S), lambda b, k: (b, 0)),         # token ids
                emb_spec,                                           # emb tile
                pl.BlockSpec((E, H), lambda b, k: (0, 0)),          # w1 / S
                pl.BlockSpec((2, H), lambda b, k: (0, 0)),          # [b1; w2]
                pl.BlockSpec(memory_space=pltpu.MemorySpace.SMEM),  # b2 scalar
            ],
            out_specs=pl.BlockSpec((tb, LANES), lambda b, k: (b, 0)),
            scratch_shapes=[pltpu.VMEM((tb, E), jnp.float32)],      # emb-sum acc
        ),
        compiler_params=pltpu.CompilerParams(
            dimension_semantics=("parallel", "arbitrary"),
            vmem_limit_bytes=32 * 1024 * 1024,
        ),
    )(ids_bs, emb_p, w1_scaled, b1w2, b2)

    # Column 0 of the lane-dense slab holds the result; match torch's
    # `.unsqueeze(2)` -> (B, 1, 1).
    return out[:B, :1].reshape(B, 1, 1)


def reference_forward(ids_sb, emb, w1, b1, w2, b2):
    embeds = jnp.take(emb, ids_sb, axis=0)           # (S, B, E)
    mean_emb = jnp.mean(embeds, axis=0)              # (B, E)
    h = jnp.maximum(
        jnp.dot(mean_emb, w1, precision=lax.Precision.HIGHEST) + b1, 0.0)
    out = jnp.dot(h, w2.T, precision=lax.Precision.HIGHEST) + b2   # (B, 1)
    return out[:, :, None]                           # (B, 1, 1)


if __name__ == "__main__":
    # Small synthetic setup; batch=12 deliberately exercises the padding path
    # (kernel-visible tiles stay (8,128)-aligned).
    vocab_size, embedding_dim, hidden_dim = 512, 128, 128
    seq_len, batch = 8, 12

    key = jax.random.PRNGKey(0)
    k_ids, k_emb, k_w1, k_b1, k_w2, k_b2 = jax.random.split(key, 6)

    ids = jax.random.randint(k_ids, (seq_len, batch), 0, vocab_size,
                             dtype=jnp.int32)

    # nn.Embedding default init: N(0, 1)
    emb = jax.random.normal(k_emb, (vocab_size, embedding_dim), jnp.float32)

    # nn.Linear default init: U(-1/sqrt(fan_in), 1/sqrt(fan_in)); w1 stored as
    # (in_features, out_features) for the kernel, w2 stored as the torch
    # (1, hidden) weight row.
    bound1 = 1.0 / (embedding_dim ** 0.5)
    w1 = jax.random.uniform(k_w1, (embedding_dim, hidden_dim), jnp.float32,
                            -bound1, bound1)
    b1 = jax.random.uniform(k_b1, (1, hidden_dim), jnp.float32, -bound1, bound1)

    bound2 = 1.0 / (hidden_dim ** 0.5)
    w2 = jax.random.uniform(k_w2, (1, hidden_dim), jnp.float32, -bound2, bound2)
    b2 = jax.random.uniform(k_b2, (1,), jnp.float32, -bound2, bound2)

    out = cbow_forward(ids, emb, w1, b1, w2, b2)
    out = jax.block_until_ready(out)

    ref = reference_forward(ids, emb, w1, b1, w2, b2)
    assert out.shape == (batch, 1, 1), out.shape
    # Tolerance loosened vs v1: in-kernel f32 MXU decomposition may differ by
    # generation from the HIGHEST-precision XLA reference.
    assert jnp.allclose(out, ref, atol=1e-4, rtol=1e-4), (out, ref)

    print("KERNEL_OK")
</pallas_src>

<mosaic_0001>
module attributes {stable_mosaic.version = 11 : i64} {
  func.func @cbow_kernel(%arg0: i32, %arg1: i32, %arg2: memref<8x8xi32, #tpu.memory_space<vmem>>, %arg3: memref<512x128xf32, #tpu.memory_space<vmem>>, %arg4: memref<128x128xf32, #tpu.memory_space<vmem>>, %arg5: memref<2x128xf32, #tpu.memory_space<vmem>>, %arg6: memref<1xf32, #tpu.memory_space<smem>>, %arg7: memref<8x128xf32, #tpu.memory_space<vmem>>, %arg8: memref<8x128xf32, #tpu.memory_space<vmem>>) attributes {dimension_semantics = [#tpu.dimension_semantics<parallel>, #tpu.dimension_semantics<arbitrary>], iteration_bounds = array<i64: 2, 1>, scalar_prefetch = 0 : i64, scratch_operands = 1 : i64, tpu.core_type = #tpu.core_type<tc>, window_params = [{transform_indices = @transform_0, window_bounds = array<i64: 8, 8>}, {transform_indices = @transform_1, window_bounds = array<i64: 512, 128>}, {pipeline_mode = #tpu.pipeline_mode<synchronous>, transform_indices = @transform_2, window_bounds = array<i64: 128, 128>}, {pipeline_mode = #tpu.pipeline_mode<synchronous>, transform_indices = @transform_3, window_bounds = array<i64: 2, 128>}, {transform_indices = @transform_4, window_bounds = array<i64: 1>}, {transform_indices = @transform_5, window_bounds = array<i64: 8, 128>}]} {
    %c0_i32 = arith.constant 0 : i32
    %0 = arith.cmpi eq, %arg1, %c0_i32 : i32
    %1 = arith.extui %0 : i1 to i32
    %c0_i32_0 = arith.constant 0 : i32
    %2 = arith.cmpi ne, %1, %c0_i32_0 : i32
    scf.if %2 {
      %cst_11 = arith.constant 0.000000e+00 : f32
      %58 = vector.broadcast %cst_11 : f32 to vector<8x128xf32>
      %c0_12 = arith.constant 0 : index
      %c0_13 = arith.constant 0 : index
      %59 = vector.load %arg8[%c0_12, %c0_13] : memref<8x128xf32, #tpu.memory_space<vmem>>, vector<8x128xf32>
      tpu.vector_store %arg8[%c0_12, %c0_13], %58 {strides = array<i32>} : memref<8x128xf32, #tpu.memory_space<vmem>>, vector<8x128xf32>,
    } else {
    }
    %c0 = arith.constant 0 : index
    %c0_1 = arith.constant 0 : index
    %3 = vector.load %arg2[%c0, %c0_1] : memref<8x8xi32, #tpu.memory_space<vmem>>, vector<8x8xi32>
    %c512_i32 = arith.constant 512 : i32
    %4 = arith.muli %arg1, %c512_i32 : i32
    %5 = vector.broadcast %4 : i32 to vector<8x8xi32>
    %6 = arith.subi %3, %5 : vector<8x8xi32>
    %7 = tpu.iota {dimensions = array<i32: 1>} : vector<8x512xi32>
    %c0_i32_2 = arith.constant 0 : i32
    %8 = vector.broadcast %c0_i32_2 : i32 to vector<8x512xi32>
    %9 = vector.extract_strided_slice %6 {offsets = [0, 0], sizes = [8, 1], strides = [1, 1]} : vector<8x8xi32> to vector<8x1xi32>
    %10 = vector.broadcast %9 : vector<8x1xi32> to vector<8x512xi32>
    %11 = arith.cmpi eq, %10, %7 : vector<8x512xi32>
    %12 = arith.extui %11 : vector<8x512xi1> to vector<8x512xi32>
    %13 = arith.addi %8, %12 : vector<8x512xi32>
    %14 = vector.extract_strided_slice %6 {offsets = [0, 1], sizes = [8, 1], strides = [1, 1]} : vector<8x8xi32> to vector<8x1xi32>
    %15 = vector.broadcast %14 : vector<8x1xi32> to vector<8x512xi32>
    %16 = arith.cmpi eq, %15, %7 : vector<8x512xi32>
    %17 = arith.extui %16 : vector<8x512xi1> to vector<8x512xi32>
    %18 = arith.addi %13, %17 : vector<8x512xi32>
    %19 = vector.extract_strided_slice %6 {offsets = [0, 2], sizes = [8, 1], strides = [1, 1]} : vector<8x8xi32> to vector<8x1xi32>
    %20 = vector.broadcast %19 : vector<8x1xi32> to vector<8x512xi32>
    %21 = arith.cmpi eq, %20, %7 : vector<8x512xi32>
    %22 = arith.extui %21 : vector<8x512xi1> to vector<8x512xi32>
    %23 = arith.addi %18, %22 : vector<8x512xi32>
    %24 = vector.extract_strided_slice %6 {offsets = [0, 3], sizes = [8, 1], strides = [1, 1]} : vector<8x8xi32> to vector<8x1xi32>
    %25 = vector.broadcast %24 : vector<8x1xi32> to vector<8x512xi32>
    %26 = arith.cmpi eq, %25, %7 : vector<8x512xi32>
    %27 = arith.extui %26 : vector<8x512xi1> to vector<8x512xi32>
    %28 = arith.addi %23, %27 : vector<8x512xi32>
    %29 = vector.extract_strided_slice %6 {offsets = [0, 4], sizes = [8, 1], strides = [1, 1]} : vector<8x8xi32> to vector<8x1xi32>
    %30 = vector.broadcast %29 : vector<8x1xi32> to vector<8x512xi32>
    %31 = arith.cmpi eq, %30, %7 : vector<8x512xi32>
    %32 = arith.extui %31 : vector<8x512xi1> to vector<8x512xi32>
    %33 = arith.addi %28, %32 : vector<8x512xi32>
    %34 = vector.extract_strided_slice %6 {offsets = [0, 5], sizes = [8, 1], strides = [1, 1]} : vector<8x8xi32> to vector<8x1xi32>
    %35 = vector.broadcast %34 : vector<8x1xi32> to vector<8x512xi32>
    %36 = arith.cmpi eq, %35, %7 : vector<8x512xi32>
    %37 = arith.extui %36 : vector<8x512xi1> to vector<8x512xi32>
    %38 = arith.addi %33, %37 : vector<8x512xi32>
    %39 = vector.extract_strided_slice %6 {offsets = [0, 6], sizes = [8, 1], strides = [1, 1]} : vector<8x8xi32> to vector<8x1xi32>
    %40 = vector.broadcast %39 : vector<8x1xi32> to vector<8x512xi32>
    %41 = arith.cmpi eq, %40, %7 : vector<8x512xi32>
    %42 = arith.extui %41 : vector<8x512xi1> to vector<8x512xi32>
    %43 = arith.addi %38, %42 : vector<8x512xi32>
    %44 = vector.extract_strided_slice %6 {offsets = [0, 7], sizes = [8, 1], strides = [1, 1]} : vector<8x8xi32> to vector<8x1xi32>
    %45 = vector.broadcast %44 : vector<8x1xi32> to vector<8x512xi32>
    %46 = arith.cmpi eq, %45, %7 : vector<8x512xi32>
    %47 = arith.extui %46 : vector<8x512xi1> to vector<8x512xi32>
    %48 = arith.addi %43, %47 : vector<8x512xi32>
    %49 = arith.sitofp %48 : vector<8x512xi32> to vector<8x512xf32>
    %c0_3 = arith.constant 0 : index
    %c0_4 = arith.constant 0 : index
    %50 = vector.load %arg8[%c0_3, %c0_4] : memref<8x128xf32, #tpu.memory_space<vmem>>, vector<8x128xf32>
    %c0_5 = arith.constant 0 : index
    %c0_6 = arith.constant 0 : index
    %51 = vector.load %arg3[%c0_5, %c0_6] : memref<512x128xf32, #tpu.memory_space<vmem>>, vector<512x128xf32>
    %cst = arith.constant dense<0.000000e+00> : vector<8x128xf32>
    %52 = tpu.matmul %49, %51, %cst {dimension_numbers = #tpu.dot_dimension_numbers<[1], [0], [0], [1], [0, 0, 1, 1], [], []>} : vector<8x512xf32>, vector<512x128xf32>, vector<8x128xf32> -> vector<8x128xf32>
    %53 = arith.addf %50, %52 : vector<8x128xf32>
    %c0_7 = arith.constant 0 : index
    %c0_8 = arith.constant 0 : index
    %54 = vector.load %arg8[%c0_7, %c0_8] : memref<8x128xf32, #tpu.memory_space<vmem>>, vector<8x128xf32>
    tpu.vector_store %arg8[%c0_7, %c0_8], %53 {strides = array<i32>} : memref<8x128xf32, #tpu.memory_space<vmem>>, vector<8x128xf32>,
    %c0_i32_9 = arith.constant 0 : i32
    %55 = arith.cmpi eq, %arg1, %c0_i32_9 : i32
    %56 = arith.extui %55 : i1 to i32
    %c0_i32_10 = arith.constant 0 : i32
    %57 = arith.cmpi ne, %56, %c0_i32_10 : i32
    scf.if %57 {
      %c0_11 = arith.constant 0 : index
      %c0_12 = arith.constant 0 : index
      %58 = vector.load %arg8[%c0_11, %c0_12] : memref<8x128xf32, #tpu.memory_space<vmem>>, vector<8x128xf32>
      %c0_13 = arith.constant 0 : index
      %c0_14 = arith.constant 0 : index
      %59 = vector.load %arg4[%c0_13, %c0_14] : memref<128x128xf32, #tpu.memory_space<vmem>>, vector<128x128xf32>
      %cst_15 = arith.constant dense<0.000000e+00> : vector<8x128xf32>
      %60 = tpu.matmul %58, %59, %cst_15 {dimension_numbers = #tpu.dot_dimension_numbers<[1], [0], [0], [1], [0, 0, 1, 1], [], []>} : vector<8x128xf32>, vector<128x128xf32>, vector<8x128xf32> -> vector<8x128xf32>
      %c0_16 = arith.constant 0 : index
      %c0_17 = arith.constant 0 : index
      %61 = vector.load %arg5[%c0_16, %c0_17] : memref<2x128xf32, #tpu.memory_space<vmem>>, vector<1x128xf32>
      %62 = vector.broadcast %61 : vector<1x128xf32> to vector<8x128xf32>
      %63 = arith.addf %60, %62 : vector<8x128xf32>
      %cst_18 = arith.constant 0.000000e+00 : f32
      %64 = vector.broadcast %cst_18 : f32 to vector<8x128xf32>
      %65 = arith.maximumf %63, %64 : vector<8x128xf32>
      %c1 = arith.constant 1 : index
      %c0_19 = arith.constant 0 : index
      %66 = vector.load %arg5[%c1, %c0_19] : memref<2x128xf32, #tpu.memory_space<vmem>>, vector<1x128xf32>
      %67 = vector.broadcast %66 : vector<1x128xf32> to vector<8x128xf32>
      %68 = arith.mulf %65, %67 : vector<8x128xf32>
      %cst_20 = arith.constant dense<0.000000e+00> : vector<8xf32>
      %69 = vector.multi_reduction <add>, %68, %cst_20 [1] : vector<8x128xf32> to vector<8xf32>
      %70 = vector.shape_cast %69 : vector<8xf32> to vector<8x1xf32>
      %c0_21 = arith.constant 0 : index
      %71 = memref.load %arg6[%c0_21] : memref<1xf32, #tpu.memory_space<smem>>
      %72 = vector.broadcast %71 : f32 to vector<8x1xf32>
      %73 = arith.addf %70, %72 : vector<8x1xf32>
      %74 = vector.shape_cast %73 : vector<8x1xf32> to vector<8x1xf32>
      %75 = vector.broadcast %74 : vector<8x1xf32> to vector<8x128xf32>
      %c0_22 = arith.constant 0 : index
      %c0_23 = arith.constant 0 : index
      %76 = vector.load %arg7[%c0_22, %c0_23] : memref<8x128xf32, #tpu.memory_space<vmem>>, vector<8x128xf32>
      tpu.vector_store %arg7[%c0_22, %c0_23], %75 {strides = array<i32>} : memref<8x128xf32, #tpu.memory_space<vmem>>, vector<8x128xf32>,
    } else {
    }
    return
  }
  func.func @transform_0(%arg0: i32, %arg1: i32) -> (i32, i32) {
    %c0_i32 = arith.constant 0 : i32
    %c0_i32_0 = arith.constant 0 : i32
    return %arg0, %c0_i32 : i32, i32
  }
  func.func @transform_1(%arg0: i32, %arg1: i32) -> (i32, i32) {
    %c0_i32 = arith.constant 0 : i32
    %c0_i32_0 = arith.constant 0 : i32
    return %arg1, %c0_i32 : i32, i32
  }
  func.func @transform_2(%arg0: i32, %arg1: i32) -> (i32, i32) {
    %c0_i32 = arith.constant 0 : i32
    %c0_i32_0 = arith.constant 0 : i32
    %c0_i32_1 = arith.constant 0 : i32
    return %c0_i32, %c0_i32_0 : i32, i32
  }
  func.func @transform_3(%arg0: i32, %arg1: i32) -> (i32, i32) {
    %c0_i32 = arith.constant 0 : i32
    %c0_i32_0 = arith.constant 0 : i32
    %c0_i32_1 = arith.constant 0 : i32
    return %c0_i32, %c0_i32_0 : i32, i32
  }
  func.func @transform_4(%arg0: i32, %arg1: i32) -> i32 {
    %c0_i32 = arith.constant 0 : i32
    %c0_i32_0 = arith.constant 0 : i32
    return %c0_i32 : i32
  }
  func.func @transform_5(%arg0: i32, %arg1: i32) -> (i32, i32) {
    %c0_i32 = arith.constant 0 : i32
    %c0_i32_0 = arith.constant 0 : i32
    return %arg0, %c0_i32 : i32, i32
  }
}

</mosaic_0001>

<llo_original>
// kernel: tpu_custom_call.1
$region0: #{tpu_custom_call.1}
  #allocation0 [shape = 'u32[]', space=smem, size = 0x4, offset = 0x4, fixed_abs, tag = 'smem constant byte address 0x4 - core index']
  #allocation1 [shape = 'u32[144,128]{1,0:T(1,128)}', space=vmem, size = 0x12000, scoped, tag = 'internal scratch']
  #allocation2 [shape = 'f32[8,128]{1,0:T(8,128)}', space=vmem, size = 0x1000, scoped, tag = 'scratch operand']
  #allocation3 [shape = 'f32[1]{0:T(128)S(6)}', space=smem, size = 0x200, scoped, tag = 'scoped memory for tpu_custom_call.1']
  %s0 = inlined_call_operand.vmem [shape: s32[16,8], index: 0, kind: input, shape index: {}]
  %s1 = inlined_call_operand.hbm [shape: f32[512,128], index: 1, kind: input, shape index: {}]
  %s2 = inlined_call_operand.hbm [shape: f32[128,128], index: 2, kind: input, shape index: {}]
  %s3 = inlined_call_operand.vmem [shape: f32[2,128], index: 3, kind: input, shape index: {}]
  %s4 = inlined_call_operand.<no memory space> [shape: f32[1], index: 4, kind: input, shape index: {}]
  %s5 = inlined_call_operand.hbm [shape: f32[16,128], index: 5, kind: output, shape index: {}]
  %s6 = sld [smem:[#allocation0]]
  $region69: #{tpu_custom_call.1} parent=0
    _
  %s8 = ssub.s32 1, %s6
  %s9 = scalar_select 0, %s8, %s6
  %10 = sst [smem:[#allocation3]] %s4
  $region1: #{tpu_custom_call.1} parent=0
    #allocation4 [shape = 'u8[262144]{0}', space=vmem, size = 0x40000, scoped, tag = 'input window, operand 1, single buffered']
    #allocation5 [shape = 's32[2]{0}', space=sflag, size = 0x8, scoped, tag = 'scoped memory for tpu_custom_call.1']
    #allocation6 [shape = 's32[2]{0}', space=sflag, size = 0x8, scoped, tag = 'scoped memory for tpu_custom_call.1']
    #allocation7 [shape = 'u8[65536]{0}', space=vmem, size = 0x10000, scoped, tag = 'input window, operand 2, single buffered']
    #allocation8 [shape = 's32[1]{0}', space=sflag, size = 0x4, scoped, tag = 'scoped memory for tpu_custom_call.1']
    #allocation9 [shape = 'u8[8192]{0}', space=vmem, size = 0x2000, scoped, tag = 'output window, operand 0']
    %11 = vsyncpa [#allocation5], 0
    %12 = vsyncpa [#allocation8], 0
    %13 = vsyncpa [#allocation6], 0
    %s14 = scalar_lea.sflag [#allocation6], 1
    %15 = vsyncpa %s14, 0
    loop: start=0, step=1, limit=4
    $region2: #{tpu_custom_call.1} parent=1 // loop_pre_header
      _
    $region3: #{tpu_custom_call.1} parent=1 // loop_header
      %s17 = sphi 0, %s21
      %p18 = scmp.ge.s32.totalorder %s17, 4
      %s24 = sphi 0, %s36
      %s25 = sphi 0, %s32
      %s26 = sphi 0, %s24
      %s27 = sphi 0, %s25
      %s28 = sphi 0, %s26
      %s29 = sphi 0, %s27
      %s39 = sphi 0, %s41
      %s42 = sphi 0, %s39
      %s43 = sphi 0, %s42
      %s59 = sphi 0, %s43
      %s65 = sphi 0, %s67
      %s68 = sphi 0, %s65
      %s69 = sphi 0, %s68
      %s85 = sphi 0, %s69
      %s89 = sphi 0, %s89
      %s91 = sphi 0, %s89
      %s92 = sphi 0, %s91
      %s106 = sphi 0, %s92
      %s110 = sphi 0, %s110
      %s112 = sphi 0, %s110
      %s113 = sphi 0, %s112
      %s127 = sphi 0, %s113
      %s131 = sphi 0, %s131
      %s133 = sphi 0, %s131
      %s134 = sphi 0, %s133
      %s148 = sphi 0, %s134
      %s154 = sphi 0, %s156
      %s157 = sphi 0, %s154
      %s158 = sphi 0, %s157
      %s174 = sphi 0, %s158
    $region4: #{tpu_custom_call.1} parent=1 // loop_header_branch
      %20 = sbr.rel (%p18) target = $region8
    $region5: #{tpu_custom_call.1} parent=1 // loop_body
      %s22 = ssub.s32 %s17, 1
      %s23 = ssub.s32 %s17, 2
      %s30 = sadd.s32 1, %s25
      %p31 = scmp.ge.s32.totalorder %s30, 1
      %s32 = scalar_select %p31, 0, %s30
      %s33 = sadd.s32 1, %s24
      %s34 = scalar_select %p31, %s33, %s24
      %p35 = scmp.ge.s32.totalorder %s34, 2
      %s36 = scalar_select %p35, 0, %s34
      %s37 = ssub.s32 %s24, %s36
      %p38 = scmp.eq.s32.totalorder %s37, 0
      %s40 = sadd.s32 %s39, 1
      %s41 = scalar_select %p38, %s39, %s40
      %p44 = pneg %p38
      %p45 = scmp.eq.s32.totalorder %s17, 1
      %p46 = por %p44, %p45
      %p47 = scmp.ne.s32.totalorder %s39, %s42
      %p48 = scmp.eq.s32.totalorder %s17, 0
      %p49 = por %p47, %p48
      %p50 = scmp.ne.s32.totalorder %s39, %s42
      %p51 = scmp.eq.s32.totalorder %s22, 1
      %p52 = por %p50, %p51
      %p53 = scmp.ne.s32.totalorder %s42, %s43
      %p54 = scmp.eq.s32.totalorder %s22, 0
      %p55 = por %p53, %p54
      %p56 = scmp.ne.s32.totalorder %s42, %s43
      %p57 = scmp.eq.s32.totalorder %s23, 1
      %p58 = por %p56, %p57
      %p60 = scmp.ne.s32.totalorder %s43, %s59
      %p61 = scmp.eq.s32.totalorder %s23, 0
      %p62 = por %p60, %p61
      %s63 = ssub.s32 %s25, %s32
      %p64 = scmp.eq.s32.totalorder %s63, 0
      %s66 = sadd.s32 %s65, 1
      %s67 = scalar_select %p64, %s65, %s66
      %p70 = pneg %p64
      %p71 = scmp.eq.s32.totalorder %s17, 1
      %p72 = por %p70, %p71
      %p73 = scmp.ne.s32.totalorder %s65, %s68
      %p74 = scmp.eq.s32.totalorder %s17, 0
      %p75 = por %p73, %p74
      %p76 = scmp.ne.s32.totalorder %s65, %s68
      %p77 = scmp.eq.s32.totalorder %s22, 1
      %p78 = por %p76, %p77
      %p79 = scmp.ne.s32.totalorder %s68, %s69
      %p80 = scmp.eq.s32.totalorder %s22, 0
      %p81 = por %p79, %p80
      %p82 = scmp.ne.s32.totalorder %s68, %s69
      %p83 = scmp.eq.s32.totalorder %s23, 1
      %p84 = por %p82, %p83
      %p86 = scmp.ne.s32.totalorder %s69, %s85
      %p87 = scmp.eq.s32.totalorder %s23, 0
      %p88 = por %p86, %p87
      %s90 = sadd.s32 %s89, 1
      %p93 = scmp.eq.s32.totalorder %s17, 1
      %p94 = scmp.ne.s32.totalorder %s89, %s91
      %p95 = scmp.eq.s32.totalorder %s17, 0
      %p96 = por %p94, %p95
      %p97 = scmp.ne.s32.totalorder %s89, %s91
      %p98 = scmp.eq.s32.totalorder %s22, 1
      %p99 = por %p97, %p98
      %p100 = scmp.ne.s32.totalorder %s91, %s92
      %p101 = scmp.eq.s32.totalorder %s22, 0
      %p102 = por %p100, %p101
      %p103 = scmp.ne.s32.totalorder %s91, %s92
      %p104 = scmp.eq.s32.totalorder %s23, 1
      %p105 = por %p103, %p104
      %p107 = scmp.ne.s32.totalorder %s92, %s106
      %p108 = scmp.eq.s32.totalorder %s23, 0
      %p109 = por %p107, %p108
      %s111 = sadd.s32 %s110, 1
      %p114 = scmp.eq.s32.totalorder %s17, 1
      %p115 = scmp.ne.s32.totalorder %s110, %s112
      %p116 = scmp.eq.s32.totalorder %s17, 0
      %p117 = por %p115, %p116
      %p118 = scmp.ne.s32.totalorder %s110, %s112
      %p119 = scmp.eq.s32.totalorder %s22, 1
      %p120 = por %p118, %p119
      %p121 = scmp.ne.s32.totalorder %s112, %s113
      %p122 = scmp.eq.s32.totalorder %s22, 0
      %p123 = por %p121, %p122
      %p124 = scmp.ne.s32.totalorder %s112, %s113
      %p125 = scmp.eq.s32.totalorder %s23, 1
      %p126 = por %p124, %p125
      %p128 = scmp.ne.s32.totalorder %s113, %s127
      %p129 = scmp.eq.s32.totalorder %s23, 0
      %p130 = por %p128, %p129
      %s132 = sadd.s32 %s131, 1
      %p135 = scmp.eq.s32.totalorder %s17, 1
      %p136 = scmp.ne.s32.totalorder %s131, %s133
      %p137 = scmp.eq.s32.totalorder %s17, 0
      %p138 = por %p136, %p137
      %p139 = scmp.ne.s32.totalorder %s131, %s133
      %p140 = scmp.eq.s32.totalorder %s22, 1
      %p141 = por %p139, %p140
      %p142 = scmp.ne.s32.totalorder %s133, %s134
      %p143 = scmp.eq.s32.totalorder %s22, 0
      %p144 = por %p142, %p143
      %p145 = scmp.ne.s32.totalorder %s133, %s134
      %p146 = scmp.eq.s32.totalorder %s23, 1
      %p147 = por %p145, %p146
      %p149 = scmp.ne.s32.totalorder %s134, %s148
      %p150 = scmp.eq.s32.totalorder %s23, 0
      %p151 = por %p149, %p150
      %s152 = ssub.s32 %s24, %s36
      %p153 = scmp.eq.s32.totalorder %s152, 0
      %s155 = sadd.s32 %s154, 1
      %s156 = scalar_select %p153, %s154, %s155
      %p159 = pneg %p153
      %p160 = scmp.eq.s32.totalorder %s17, 1
      %p161 = por %p159, %p160
      %p162 = scmp.ne.s32.totalorder %s154, %s157
      %p163 = scmp.eq.s32.totalorder %s17, 0
      %p164 = por %p162, %p163
      %p165 = scmp.ne.s32.totalorder %s154, %s157
      %p166 = scmp.eq.s32.totalorder %s22, 1
      %p167 = por %p165, %p166
      %p168 = scmp.ne.s32.totalorder %s157, %s158
      %p169 = scmp.eq.s32.totalorder %s22, 0
      %p170 = por %p168, %p169
      %p171 = scmp.ne.s32.totalorder %s157, %s158
      %p172 = scmp.eq.s32.totalorder %s23, 1
      %p173 = por %p171, %p172
      %p175 = scmp.ne.s32.totalorder %s158, %s174
      %p176 = scmp.eq.s32.totalorder %s23, 0
      %p177 = por %p175, %p176
      %p178 = scmp.le.s32.totalorder 1, %s17
      %p179 = scmp.lt.s32.totalorder %s17, 3
      %p180 = pnand %p178, %p179
      %p181 = pneg %p180
      // Predicated region
      $region9: #{tpu_custom_call.1} parent=5 // pred_check
        _
      $region10: #{tpu_custom_call.1} parent=5 // pred_check_branch
        %183 = sbr.rel (%p180) target = $region12
      $region11: #{tpu_custom_call.1} parent=5 // pred_region
        %s184 = ssub.s32 %s17, 1
        // Predicated region
        $region13: #{tpu_custom_call.1} parent=11 // pred_check
          %p185 = pneg %p81
        $region14: #{tpu_custom_call.1} parent=11 // pred_check_branch
          %187 = sbr.rel (%p185) target = $region16
        $region15: #{tpu_custom_call.1} parent=11 // pred_region
          %s188 = smul.u32 64, %s27
          %s190 = ssub.s32 8192, 8192
          %191 = vsyncadd [#allocation5], %s190
          %s192 = smul.addr %s188, 128
          %s193 = scalar_lea.hbm %s1, %s192
          %s194 = sshll.u32 [#allocation4], 4
          %s195 = int_to_ptr.vmem [resolvable:$true] %s194
          %200 = dma.hbm_to_vmem [thread:$0]  %s193, 8192, %s195, [#allocation5], 128, 128, 8
        $region16: #{tpu_custom_call.1} parent=11 // pred_fallthru
          _
        // Predicated region
        $region17: #{tpu_custom_call.1} parent=11 // pred_check
          %p201 = pneg %p102
        $region18: #{tpu_custom_call.1} parent=11 // pred_check_branch
          %203 = sbr.rel (%p201) target = $region20
        $region19: #{tpu_custom_call.1} parent=11 // pred_region
          %s205 = ssub.s32 2048, 2048
          %206 = vsyncadd [#allocation8], %s205
          %s207 = sshll.u32 [#allocation7], 4
          %s208 = int_to_ptr.vmem [resolvable:$true] %s207
          %213 = dma.hbm_to_vmem [thread:$0]  %s2, 2048, %s208, [#allocation8], 128, 128, 8
        $region20: #{tpu_custom_call.1} parent=11 // pred_fallthru
          _
        // Predicated region
        $region21: #{tpu_custom_call.1} parent=11 // pred_check
          %p214 = pneg %p123
        $region22: #{tpu_custom_call.1} parent=11 // pred_check_branch
          %216 = sbr.rel (%p214) target = $region24
        $region23: #{tpu_custom_call.1} parent=11 // pred_region
          _
        $region24: #{tpu_custom_call.1} parent=11 // pred_fallthru
          _
        // Predicated region
        $region25: #{tpu_custom_call.1} parent=11 // pred_check
          %p217 = pneg %p144
        $region26: #{tpu_custom_call.1} parent=11 // pred_check_branch
          %219 = sbr.rel (%p217) target = $region28
        $region27: #{tpu_custom_call.1} parent=11 // pred_region
          _
        $region28: #{tpu_custom_call.1} parent=11 // pred_fallthru
          _
      $region12: #{tpu_custom_call.1} parent=5 // pred_fallthru
        _
      %p220 = scmp.lt.s32.totalorder %s17, 2
      // Predicated region
      $region29: #{tpu_custom_call.1} parent=5 // pred_check
        %p221 = pneg %p220
      $region30: #{tpu_custom_call.1} parent=5 // pred_check_branch
        %223 = sbr.rel (%p221) target = $region32
      $region31: #{tpu_custom_call.1} parent=5 // pred_region
        // Predicated region
        $region33: #{tpu_custom_call.1} parent=31 // pred_check
          %p224 = pneg %p49
        $region34: #{tpu_custom_call.1} parent=31 // pred_check_branch
          %226 = sbr.rel (%p224) target = $region36
        $region35: #{tpu_custom_call.1} parent=31 // pred_region
          %p227 = scmp.lt.s32.totalorder %s24, 1
          %s228 = scalar_select %p227, %s24, 1
          %s229 = smul.addr %s228, 8
          %s230 = scalar_lea.vmem %s0, %s229
        $region36: #{tpu_custom_call.1} parent=31 // pred_fallthru
          _
      $region32: #{tpu_custom_call.1} parent=5 // pred_fallthru
        _
      %p231 = scmp.le.s32.totalorder 1, %s17
      %p232 = scmp.lt.s32.totalorder %s17, 3
      %p233 = pnand %p231, %p232
      %p234 = pneg %p233
      // Predicated region
      $region37: #{tpu_custom_call.1} parent=5 // pred_check
        _
      $region38: #{tpu_custom_call.1} parent=5 // pred_check_branch
        %236 = sbr.rel (%p233) target = $region40
      $region39: #{tpu_custom_call.1} parent=5 // pred_region
        %s237 = ssub.s32 %s17, 1
        // Predicated region
        $region41: #{tpu_custom_call.1} parent=39 // pred_check
          %p238 = pneg %p81
        $region42: #{tpu_custom_call.1} parent=39 // pred_check_branch
          %240 = sbr.rel (%p238) target = $region44
        $region43: #{tpu_custom_call.1} parent=39 // pred_region
          %241 = dma.done [#allocation5], 8192
        $region44: #{tpu_custom_call.1} parent=39 // pred_fallthru
          _
        // Predicated region
        $region45: #{tpu_custom_call.1} parent=39 // pred_check
          %p242 = pneg %p102
        $region46: #{tpu_custom_call.1} parent=39 // pred_check_branch
          %244 = sbr.rel (%p242) target = $region48
        $region47: #{tpu_custom_call.1} parent=39 // pred_region
          %245 = dma.done [#allocation8], 2048
        $region48: #{tpu_custom_call.1} parent=39 // pred_fallthru
          _
        %p246 = scmp.lt.s32.totalorder %s26, 1
        %s247 = scalar_select %p246, %s26, 1
        %s248 = smul.addr %s247, 8
        %s249 = scalar_lea.vmem %s0, %s248
        %p250 = pneg %p55
        %p251 = pneg %p52
        %p252 = pneg %p81
        %p253 = pneg %p78
        %p254 = pneg %p102
        %p255 = pneg %p99
        %p256 = pneg %p123
        %p257 = pneg %p120
        %p258 = pneg %p144
        %p259 = pneg %p141
        %p260 = pneg %p170
        %p261 = pneg %p167
        %s262 = sand.u32 %s157, 1
        %s263 = scalar_lea.sflag [#allocation6], %s262
        %s264 = sand.u32 %s157, 1
        %s265 = smul.addr %s264, 8
        %s266 = scalar_lea.vmem [#allocation9], %s265
        %p267 = scmp.lt.s32.totalorder %s26, 1
        %s268 = scalar_select %p267, %s26, 1
        %s269 = smul.addr %s268, 8
        %s270 = scalar_lea.vmem %s0, %s269
        %s271 = smul.u32 64, %s27
        %p272 = scmp.eq.s32.totalorder %s27, 0
        // Predicated region
        $region49: #{tpu_custom_call.1} parent=39 // pred_check
          %p273 = pneg %p272
        $region50: #{tpu_custom_call.1} parent=39 // pred_check_branch
          %275 = sbr.rel (%p273) target = $region52
        $region51: #{tpu_custom_call.1} parent=39 // pred_region
          %276 = vst [vmem:[#allocation2] sm:$0xff] 0.0
        $region52: #{tpu_custom_call.1} parent=39 // pred_fallthru
          _
        %v277 = vld [vmem:[%s270] sm:$0xff]
        %s278 = smul.u32 %s27, 512
        %v279 = vstv %s278
        %v280 = vsub.s32 %v277, %v279
        %v281 = vlaneseq
        %v282 = vand.u32 %v281, 127
        %v283 = vadd.s32 %v282, 128
        %v284 = vadd.s32 %v282, 256
        %v285 = vadd.s32 %v282, 384
        %286 = vset.pattern.permute.xlu0 0
        %287 = vperm.xlu0 %286, %v280
        %v288 = vpop.permute.xlu0 %287
        %vm289 = vcmp.eq.s32.totalorder %v288, %v282
        %vm290 = vcmp.eq.s32.totalorder %v288, %v283
        %vm291 = vcmp.eq.s32.totalorder %v288, %v284
        %vm292 = vcmp.eq.s32.totalorder %v288, %v285
        %v293 = vsel %vm289, 1, 0
        %v294 = vsel %vm290, 1, 0
        %v295 = vsel %vm291, 1, 0
        %v296 = vsel %vm292, 1, 0
        %297 = vset.pattern.permute.xlu0 1
        %298 = vperm.xlu0 %297, %v280
        %v299 = vpop.permute.xlu0 %298
        %vm300 = vcmp.eq.s32.totalorder %v299, %v282
        %vm301 = vcmp.eq.s32.totalorder %v299, %v283
        %vm302 = vcmp.eq.s32.totalorder %v299, %v284
        %vm303 = vcmp.eq.s32.totalorder %v299, %v285
        %v304 = vsel %vm300, 1, 0
        %v305 = vsel %vm301, 1, 0
        %v306 = vsel %vm302, 1, 0
        %v307 = vsel %vm303, 1, 0
        %v308 = vadd.s32 %v293, %v304
        %v309 = vadd.s32 %v294, %v305
        %v310 = vadd.s32 %v295, %v306
        %v311 = vadd.s32 %v296, %v307
        %312 = vset.pattern.permute.xlu0 2
        %313 = vperm.xlu0 %312, %v280
        %v314 = vpop.permute.xlu0 %313
        %vm315 = vcmp.eq.s32.totalorder %v314, %v282
        %vm316 = vcmp.eq.s32.totalorder %v314, %v283
        %vm317 = vcmp.eq.s32.totalorder %v314, %v284
        %vm318 = vcmp.eq.s32.totalorder %v314, %v285
        %v319 = vsel %vm315, 1, 0
        %v320 = vsel %vm316, 1, 0
        %v321 = vsel %vm317, 1, 0
        %v322 = vsel %vm318, 1, 0
        %v323 = vadd.s32 %v308, %v319
        %v324 = vadd.s32 %v309, %v320
        %v325 = vadd.s32 %v310, %v321
        %v326 = vadd.s32 %v311, %v322
        %327 = vset.pattern.permute.xlu0 3
        %328 = vperm.xlu0 %327, %v280
        %v329 = vpop.permute.xlu0 %328
        %vm330 = vcmp.eq.s32.totalorder %v329, %v282
        %vm331 = vcmp.eq.s32.totalorder %v329, %v283
        %vm332 = vcmp.eq.s32.totalorder %v329, %v284
        %vm333 = vcmp.eq.s32.totalorder %v329, %v285
        %v334 = vsel %vm330, 1, 0
        %v335 = vsel %vm331, 1, 0
        %v336 = vsel %vm332, 1, 0
        %v337 = vsel %vm333, 1, 0
        %v338 = vadd.s32 %v323, %v334
        %v339 = vadd.s32 %v324, %v335
        %v340 = vadd.s32 %v325, %v336
        %v341 = vadd.s32 %v326, %v337
        %342 = vset.pattern.permute.xlu0 4
        %343 = vperm.xlu0 %342, %v280
        %v344 = vpop.permute.xlu0 %343
        %vm345 = vcmp.eq.s32.totalorder %v344, %v282
        %vm346 = vcmp.eq.s32.totalorder %v344, %v283
        %vm347 = vcmp.eq.s32.totalorder %v344, %v284
        %vm348 = vcmp.eq.s32.totalorder %v344, %v285
        %v349 = vsel %vm345, 1, 0
        %v350 = vsel %vm346, 1, 0
        %v351 = vsel %vm347, 1, 0
        %v352 = vsel %vm348, 1, 0
        %v353 = vadd.s32 %v338, %v349
        %v354 = vadd.s32 %v339, %v350
        %v355 = vadd.s32 %v340, %v351
        %v356 = vadd.s32 %v341, %v352
        %357 = vset.pattern.permute.xlu0 5
        %358 = vperm.xlu0 %357, %v280
        %v359 = vpop.permute.xlu0 %358
        %vm360 = vcmp.eq.s32.totalorder %v359, %v282
        %vm361 = vcmp.eq.s32.totalorder %v359, %v283
        %vm362 = vcmp.eq.s32.totalorder %v359, %v284
        %vm363 = vcmp.eq.s32.totalorder %v359, %v285
        %v364 = vsel %vm360, 1, 0
        %v365 = vsel %vm361, 1, 0
        %v366 = vsel %vm362, 1, 0
        %v367 = vsel %vm363, 1, 0
        %v368 = vadd.s32 %v353, %v364
        %v369 = vadd.s32 %v354, %v365
        %v370 = vadd.s32 %v355, %v366
        %v371 = vadd.s32 %v356, %v367
        %372 = vset.pattern.permute.xlu0 6
        %373 = vperm.xlu0 %372, %v280
        %v374 = vpop.permute.xlu0 %373
        %vm375 = vcmp.eq.s32.totalorder %v374, %v282
        %vm376 = vcmp.eq.s32.totalorder %v374, %v283
        %vm377 = vcmp.eq.s32.totalorder %v374, %v284
        %vm378 = vcmp.eq.s32.totalorder %v374, %v285
        %v379 = vsel %vm375, 1, 0
        %v380 = vsel %vm376, 1, 0
        %v381 = vsel %vm377, 1, 0
        %v382 = vsel %vm378, 1, 0
        %v383 = vadd.s32 %v368, %v379
        %v384 = vadd.s32 %v369, %v380
        %v385 = vadd.s32 %v370, %v381
        %v386 = vadd.s32 %v371, %v382
        %387 = vset.pattern.permute.xlu0 7
        %388 = vperm.xlu0 %387, %v280
        %v389 = vpop.permute.xlu0 %388
        %vm390 = vcmp.eq.s32.totalorder %v389, %v282
        %vm391 = vcmp.eq.s32.totalorder %v389, %v283
        %vm392 = vcmp.eq.s32.totalorder %v389, %v284
        %vm393 = vcmp.eq.s32.totalorder %v389, %v285
        %v394 = vsel %vm390, 1, 0
        %v395 = vsel %vm391, 1, 0
        %v396 = vsel %vm392, 1, 0
        %v397 = vsel %vm393, 1, 0
        %v398 = vadd.s32 %v383, %v394
        %v399 = vadd.s32 %v384, %v395
        %v400 = vadd.s32 %v385, %v396
        %v401 = vadd.s32 %v386, %v397
        %v402 = vcvt.s32.f32 %v398
        %v403 = vcvt.s32.f32 %v399
        %v404 = vcvt.s32.f32 %v400
        %v405 = vcvt.s32.f32 %v401
        %v406 = vld [vmem:[#allocation2] sm:$0xff]
        %v407 = vld [vmem:[#allocation4] sm:$0xff]
        %v408 = vld [vmem:[#allocation4 + $0x8] sm:$0xff]
        %v409 = vld [vmem:[#allocation4 + $0x10] sm:$0xff]
        %v410 = vld [vmem:[#allocation4 + $0x18] sm:$0xff]
        %v411 = vld [vmem:[#allocation4 + $0x20] sm:$0xff]
        %v412 = vld [vmem:[#allocation4 + $0x28] sm:$0xff]
        %v413 = vld [vmem:[#allocation4 + $0x30] sm:$0xff]
        %v414 = vld [vmem:[#allocation4 + $0x38] sm:$0xff]
        %v415 = vld [vmem:[#allocation4 + $0x40] sm:$0xff]
        %v416 = vld [vmem:[#allocation4 + $0x48] sm:$0xff]
        %v417 = vld [vmem:[#allocation4 + $0x50] sm:$0xff]
        %v418 = vld [vmem:[#allocation4 + $0x58] sm:$0xff]
        %v419 = vld [vmem:[#allocation4 + $0x60] sm:$0xff]
        %v420 = vld [vmem:[#allocation4 + $0x68] sm:$0xff]
        %v421 = vld [vmem:[#allocation4 + $0x70] sm:$0xff]
        %v422 = vld [vmem:[#allocation4 + $0x78] sm:$0xff]
        %v423 = vld [vmem:[#allocation4 + $0x80] sm:$0xff]
        %v424 = vld [vmem:[#allocation4 + $0x88] sm:$0xff]
        %v425 = vld [vmem:[#allocation4 + $0x90] sm:$0xff]
        %v426 = vld [vmem:[#allocation4 + $0x98] sm:$0xff]
        %v427 = vld [vmem:[#allocation4 + $0xa0] sm:$0xff]
        %v428 = vld [vmem:[#allocation4 + $0xa8] sm:$0xff]
        %v429 = vld [vmem:[#allocation4 + $0xb0] sm:$0xff]
        %v430 = vld [vmem:[#allocation4 + $0xb8] sm:$0xff]
        %v431 = vld [vmem:[#allocation4 + $0xc0] sm:$0xff]
        %v432 = vld [vmem:[#allocation4 + $0xc8] sm:$0xff]
        %v433 = vld [vmem:[#allocation4 + $0xd0] sm:$0xff]
        %v434 = vld [vmem:[#allocation4 + $0xd8] sm:$0xff]
        %v435 = vld [vmem:[#allocation4 + $0xe0] sm:$0xff]
        %v436 = vld [vmem:[#allocation4 + $0xe8] sm:$0xff]
        %v437 = vld [vmem:[#allocation4 + $0xf0] sm:$0xff]
        %v438 = vld [vmem:[#allocation4 + $0xf8] sm:$0xff]
        %v439 = vld [vmem:[#allocation4 + $0x100] sm:$0xff]
        %v440 = vld [vmem:[#allocation4 + $0x108] sm:$0xff]
        %v441 = vld [vmem:[#allocation4 + $0x110] sm:$0xff]
        %v442 = vld [vmem:[#allocation4 + $0x118] sm:$0xff]
        %v443 = vld [vmem:[#allocation4 + $0x120] sm:$0xff]
        %v444 = vld [vmem:[#allocation4 + $0x128] sm:$0xff]
        %v445 = vld [vmem:[#allocation4 + $0x130] sm:$0xff]
        %v446 = vld [vmem:[#allocation4 + $0x138] sm:$0xff]
        %v447 = vld [vmem:[#allocation4 + $0x140] sm:$0xff]
        %v448 = vld [vmem:[#allocation4 + $0x148] sm:$0xff]
        %v449 = vld [vmem:[#allocation4 + $0x150] sm:$0xff]
        %v450 = vld [vmem:[#allocation4 + $0x158] sm:$0xff]
        %v451 = vld [vmem:[#allocation4 + $0x160] sm:$0xff]
        %v452 = vld [vmem:[#allocation4 + $0x168] sm:$0xff]
        %v453 = vld [vmem:[#allocation4 + $0x170] sm:$0xff]
        %v454 = vld [vmem:[#allocation4 + $0x178] sm:$0xff]
        %v455 = vld [vmem:[#allocation4 + $0x180] sm:$0xff]
        %v456 = vld [vmem:[#allocation4 + $0x188] sm:$0xff]
        %v457 = vld [vmem:[#allocation4 + $0x190] sm:$0xff]
        %v458 = vld [vmem:[#allocation4 + $0x198] sm:$0xff]
        %v459 = vld [vmem:[#allocation4 + $0x1a0] sm:$0xff]
        %v460 = vld [vmem:[#allocation4 + $0x1a8] sm:$0xff]
        %v461 = vld [vmem:[#allocation4 + $0x1b0] sm:$0xff]
        %v462 = vld [vmem:[#allocation4 + $0x1b8] sm:$0xff]
        %v463 = vld [vmem:[#allocation4 + $0x1c0] sm:$0xff]
        %v464 = vld [vmem:[#allocation4 + $0x1c8] sm:$0xff]
        %v465 = vld [vmem:[#allocation4 + $0x1d0] sm:$0xff]
        %v466 = vld [vmem:[#allocation4 + $0x1d8] sm:$0xff]
        %v467 = vld [vmem:[#allocation4 + $0x1e0] sm:$0xff]
        %v468 = vld [vmem:[#allocation4 + $0x1e8] sm:$0xff]
        %v469 = vld [vmem:[#allocation4 + $0x1f0] sm:$0xff]
        %v470 = vld [vmem:[#allocation4 + $0x1f8] sm:$0xff]
        %471 = vmatprep.subr.mxu0 0.0
        %472 = vmatpush1.msra.mxu0 %v407
        %473 = vmatprep.subr.mxu0 0.0
        %474 = vmatpush1.msra.mxu0 %v408
        %475 = vmatprep.subr.mxu0 0.0
        %476 = vmatpush1.msra.mxu0 %v409
        %477 = vmatprep.subr.mxu0 0.0
        %478 = vmatpush1.msra.mxu0 %v410
        %479 = vmatprep.subr.mxu0 0.0
        %480 = vmatpush1.msra.mxu0 %v411
        %481 = vmatprep.subr.mxu0 0.0
        %482 = vmatpush1.msra.mxu0 %v412
        %483 = vmatprep.subr.mxu0 0.0
        %484 = vmatpush1.msra.mxu0 %v413
        %485 = vmatprep.subr.mxu0 0.0
        %486 = vmatpush1.msra.mxu0 %v414
        %487 = vmatprep.subr.mxu0 0.0
        %488 = vmatpush1.msra.mxu0 %v415
        %489 = vmatprep.subr.mxu0 0.0
        %490 = vmatpush1.msra.mxu0 %v416
        %491 = vmatprep.subr.mxu0 0.0
        %492 = vmatpush1.msra.mxu0 %v417
        %493 = vmatprep.subr.mxu0 0.0
        %494 = vmatpush1.msra.mxu0 %v418
        %495 = vmatprep.subr.mxu0 0.0
        %496 = vmatpush1.msra.mxu0 %v419
        %497 = vmatprep.subr.mxu0 0.0
        %498 = vmatpush1.msra.mxu0 %v420
        %499 = vmatprep.subr.mxu0 0.0
        %500 = vmatpush1.msra.mxu0 %v421
        %501 = vmatprep.subr.mxu0 0.0
        %502 = vmatpush1.msra.mxu0 %v422
        %503 = vmatprep.subr.mxu0 0.0
        %504 = vmatpush1.msra.mxu0 %v423
        %505 = vmatprep.subr.mxu0 0.0
        %506 = vmatpush1.msra.mxu0 %v424
        %507 = vmatprep.subr.mxu0 0.0
        %508 = vmatpush1.msra.mxu0 %v425
        %509 = vmatprep.subr.mxu0 0.0
        %510 = vmatpush1.msra.mxu0 %v426
        %511 = vmatprep.subr.mxu0 0.0
        %512 = vmatpush1.msra.mxu0 %v427
        %513 = vmatprep.subr.mxu0 0.0
        %514 = vmatpush1.msra.mxu0 %v428
        %515 = vmatprep.subr.mxu0 0.0
        %516 = vmatpush1.msra.mxu0 %v429
        %517 = vmatprep.subr.mxu0 0.0
        %518 = vmatpush1.msra.mxu0 %v430
        %519 = vmatprep.subr.mxu0 0.0
        %520 = vmatpush1.msra.mxu0 %v431
        %521 = vmatprep.subr.mxu0 0.0
        %522 = vmatpush1.msra.mxu0 %v432
        %523 = vmatprep.subr.mxu0 0.0
        %524 = vmatpush1.msra.mxu0 %v433
        %525 = vmatprep.subr.mxu0 0.0
        %526 = vmatpush1.msra.mxu0 %v434
        %527 = vmatprep.subr.mxu0 0.0
        %528 = vmatpush1.msra.mxu0 %v435
        %529 = vmatprep.subr.mxu0 0.0
        %530 = vmatpush1.msra.mxu0 %v436
        %531 = vmatprep.subr.mxu0 0.0
        %532 = vmatpush1.msra.mxu0 %v437
        %533 = vmatprep.subr.mxu0 0.0
        %534 = vmatpush1.msra.mxu0 %v438
        %535 = vmatprep.mubr.f32.mxu0 %v403
        %536 = vmatmul.mubr.f32.gmra.mrb[0].mxu0 %v402
        %v537 = vpop.f32.mrb[0].mxu0
        %v538 = vadd.f32 0.0, %v537
        %v539 = vpop.f32.mrb[0].mxu0
        %540 = vdwg.mxu0
        %541 = vmatprep.subr.mxu0 0.0
        %542 = vmatpush1.msra.mxu0 %v439
        %543 = vmatprep.subr.mxu0 0.0
        %544 = vmatpush1.msra.mxu0 %v440
        %545 = vmatprep.subr.mxu0 0.0
        %546 = vmatpush1.msra.mxu0 %v441
        %547 = vmatprep.subr.mxu0 0.0
        %548 = vmatpush1.msra.mxu0 %v442
        %549 = vmatprep.subr.mxu0 0.0
        %550 = vmatpush1.msra.mxu0 %v443
        %551 = vmatprep.subr.mxu0 0.0
        %552 = vmatpush1.msra.mxu0 %v444
        %553 = vmatprep.subr.mxu0 0.0
        %554 = vmatpush1.msra.mxu0 %v445
        %555 = vmatprep.subr.mxu0 0.0
        %556 = vmatpush1.msra.mxu0 %v446
        %557 = vmatprep.subr.mxu0 0.0
        %558 = vmatpush1.msra.mxu0 %v447
        %559 = vmatprep.subr.mxu0 0.0
        %560 = vmatpush1.msra.mxu0 %v448
        %561 = vmatprep.subr.mxu0 0.0
        %562 = vmatpush1.msra.mxu0 %v449
        %563 = vmatprep.subr.mxu0 0.0
        %564 = vmatpush1.msra.mxu0 %v450
        %565 = vmatprep.subr.mxu0 0.0
        %566 = vmatpush1.msra.mxu0 %v451
        %567 = vmatprep.subr.mxu0 0.0
        %568 = vmatpush1.msra.mxu0 %v452
        %569 = vmatprep.subr.mxu0 0.0
        %570 = vmatpush1.msra.mxu0 %v453
        %571 = vmatprep.subr.mxu0 0.0
        %572 = vmatpush1.msra.mxu0 %v454
        %573 = vmatprep.subr.mxu0 0.0
        %574 = vmatpush1.msra.mxu0 %v455
        %575 = vmatprep.subr.mxu0 0.0
        %576 = vmatpush1.msra.mxu0 %v456
        %577 = vmatprep.subr.mxu0 0.0
        %578 = vmatpush1.msra.mxu0 %v457
        %579 = vmatprep.subr.mxu0 0.0
        %580 = vmatpush1.msra.mxu0 %v458
        %581 = vmatprep.subr.mxu0 0.0
        %582 = vmatpush1.msra.mxu0 %v459
        %583 = vmatprep.subr.mxu0 0.0
        %584 = vmatpush1.msra.mxu0 %v460
        %585 = vmatprep.subr.mxu0 0.0
        %586 = vmatpush1.msra.mxu0 %v461
        %587 = vmatprep.subr.mxu0 0.0
        %588 = vmatpush1.msra.mxu0 %v462
        %589 = vmatprep.subr.mxu0 0.0
        %590 = vmatpush1.msra.mxu0 %v463
        %591 = vmatprep.subr.mxu0 0.0
        %592 = vmatpush1.msra.mxu0 %v464
        %593 = vmatprep.subr.mxu0 0.0
        %594 = vmatpush1.msra.mxu0 %v465
        %595 = vmatprep.subr.mxu0 0.0
        %596 = vmatpush1.msra.mxu0 %v466
        %597 = vmatprep.subr.mxu0 0.0
        %598 = vmatpush1.msra.mxu0 %v467
        %599 = vmatprep.subr.mxu0 0.0
        %600 = vmatpush1.msra.mxu0 %v468
        %601 = vmatprep.subr.mxu0 0.0
        %602 = vmatpush1.msra.mxu0 %v469
        %603 = vmatprep.subr.mxu0 0.0
        %604 = vmatpush1.msra.mxu0 %v470
        %605 = vmatprep.mubr.f32.mxu0 %v405
        %606 = vmatmul.mubr.f32.gmra.mrb[0].mxu0 %v404
        %v607 = vpop.f32.mrb[0].mxu0
        %v608 = vadd.f32 %v538, %v607
        %v609 = vpop.f32.mrb[0].mxu0
        %610 = vdwg.mxu0
        %v611 = vadd.f32 %v406, %v608
        %612 = vst [vmem:[#allocation2] sm:$0xff] %v611
        // Predicated region
        $region53: #{tpu_custom_call.1} parent=39 // pred_check
          %p613 = pneg %p272
        $region54: #{tpu_custom_call.1} parent=39 // pred_check_branch
          %615 = sbr.rel (%p613) target = $region56
        $region55: #{tpu_custom_call.1} parent=39 // pred_region
          %v616 = vld [vmem:[#allocation2] sm:$0xff]
          %v617 = vld [vmem:[#allocation7] sm:$0xff]
          %v618 = vld [vmem:[#allocation7 + $0x8] sm:$0xff]
          %v619 = vld [vmem:[#allocation7 + $0x10] sm:$0xff]
          %v620 = vld [vmem:[#allocation7 + $0x18] sm:$0xff]
          %v621 = vld [vmem:[#allocation7 + $0x20] sm:$0xff]
          %v622 = vld [vmem:[#allocation7 + $0x28] sm:$0xff]
          %v623 = vld [vmem:[#allocation7 + $0x30] sm:$0xff]
          %v624 = vld [vmem:[#allocation7 + $0x38] sm:$0xff]
          %v625 = vld [vmem:[#allocation7 + $0x40] sm:$0xff]
          %v626 = vld [vmem:[#allocation7 + $0x48] sm:$0xff]
          %v627 = vld [vmem:[#allocation7 + $0x50] sm:$0xff]
          %v628 = vld [vmem:[#allocation7 + $0x58] sm:$0xff]
          %v629 = vld [vmem:[#allocation7 + $0x60] sm:$0xff]
          %v630 = vld [vmem:[#allocation7 + $0x68] sm:$0xff]
          %v631 = vld [vmem:[#allocation7 + $0x70] sm:$0xff]
          %v632 = vld [vmem:[#allocation7 + $0x78] sm:$0xff]
          %v633 = vld [vmem:[%s3] sm:$0x1]
          %v634 = vlaneseq
          %v635 = vshrl.u32 %v634, 7
          %v636 = vsub.s32 0, %v635
          %v637 = vrot.slane %v633, %v636
          %638 = vmatprep.subr.mxu0 0.0
          %639 = vmatpush1.msra.mxu0 %v617
          %640 = vmatprep.subr.mxu0 0.0
          %641 = vmatpush1.msra.mxu0 %v618
          %642 = vmatprep.subr.mxu0 0.0
          %643 = vmatpush1.msra.mxu0 %v619
          %644 = vmatprep.subr.mxu0 0.0
          %645 = vmatpush1.msra.mxu0 %v620
          %646 = vmatprep.subr.mxu0 0.0
          %647 = vmatpush1.msra.mxu0 %v621
          %648 = vmatprep.subr.mxu0 0.0
          %649 = vmatpush1.msra.mxu0 %v622
          %650 = vmatprep.subr.mxu0 0.0
          %651 = vmatpush1.msra.mxu0 %v623
          %652 = vmatprep.subr.mxu0 0.0
          %653 = vmatpush1.msra.mxu0 %v624
          %654 = vmatprep.subr.mxu0 0.0
          %655 = vmatpush1.msra.mxu0 %v625
          %656 = vmatprep.subr.mxu0 0.0
          %657 = vmatpush1.msra.mxu0 %v626
          %658 = vmatprep.subr.mxu0 0.0
          %659 = vmatpush1.msra.mxu0 %v627
          %660 = vmatprep.subr.mxu0 0.0
          %661 = vmatpush1.msra.mxu0 %v628
          %662 = vmatprep.subr.mxu0 0.0
          %663 = vmatpush1.msra.mxu0 %v629
          %664 = vmatprep.subr.mxu0 0.0
          %665 = vmatpush1.msra.mxu0 %v630
          %666 = vmatprep.subr.mxu0 0.0
          %667 = vmatpush1.msra.mxu0 %v631
          %668 = vmatprep.subr.mxu0 0.0
          %669 = vmatpush1.msra.mxu0 %v632
          %670 = vmatprep.subr.mxu0 0.0
          %671 = vmatpush1.msra.mxu0 0.0
          %672 = vmatprep.subr.mxu0 0.0
          %673 = vmatpush1.msra.mxu0 0.0
          %674 = vmatprep.subr.mxu0 0.0
          %675 = vmatpush1.msra.mxu0 0.0
          %676 = vmatprep.subr.mxu0 0.0
          %677 = vmatpush1.msra.mxu0 0.0
          %678 = vmatprep.subr.mxu0 0.0
          %679 = vmatpush1.msra.mxu0 0.0
          %680 = vmatprep.subr.mxu0 0.0
          %681 = vmatpush1.msra.mxu0 0.0
          %682 = vmatprep.subr.mxu0 0.0
          %683 = vmatpush1.msra.mxu0 0.0
          %684 = vmatprep.subr.mxu0 0.0
          %685 = vmatpush1.msra.mxu0 0.0
          %686 = vmatprep.subr.mxu0 0.0
          %687 = vmatpush1.msra.mxu0 0.0
          %688 = vmatprep.subr.mxu0 0.0
          %689 = vmatpush1.msra.mxu0 0.0
          %690 = vmatprep.subr.mxu0 0.0
          %691 = vmatpush1.msra.mxu0 0.0
          %692 = vmatprep.subr.mxu0 0.0
          %693 = vmatpush1.msra.mxu0 0.0
          %694 = vmatprep.subr.mxu0 0.0
          %695 = vmatpush1.msra.mxu0 0.0
          %696 = vmatprep.subr.mxu0 0.0
          %697 = vmatpush1.msra.mxu0 0.0
          %698 = vmatprep.subr.mxu0 0.0
          %699 = vmatpush1.msra.mxu0 0.0
          %700 = vmatprep.subr.mxu0 0.0
          %701 = vmatpush1.msra.mxu0 0.0
          %702 = vmatprep.mubr.f32.mxu0 0.0
          %703 = vmatmul.mubr.f32.gmra.mrb[0].mxu0 %v616
          %v704 = vpop.f32.mrb[0].mxu0
          %v705 = vadd.f32 %v637, %v704
          %v706 = vpop.f32.mrb[0].mxu0
          %707 = vdwg.mxu0
          %v708 = vmax.f32 %v705, 0.0
          %v709 = vld [vmem:[%s3 + $0x1] sm:$0x1]
          %v710 = vlaneseq
          %v711 = vshrl.u32 %v710, 7
          %v712 = vsub.s32 0, %v711
          %v713 = vrot.slane %v709, %v712
          %v714 = vmul.f32 %v708, %v713
          %715 = vadd.xlane.f32.xlu0 %v714
          %v716 = vpop.xlane.xlu0 %715
          %s717 = sld [smem:[#allocation3]]
          %v718 = vstv %s717
          %v719 = vadd.f32 %v716, %v718
          %720 = vst [vmem:[%s266] sm:$0xff] %v719
        $region56: #{tpu_custom_call.1} parent=39 // pred_fallthru
          _
        %s721 = sand.u32 %s157, 1
        %s722 = scalar_lea.sflag [#allocation6], %s721
        %s723 = sand.u32 %s157, 1
        %s724 = smul.addr %s723, 8
        %s725 = scalar_lea.vmem [#allocation9], %s724
        // Predicated region
        $region57: #{tpu_custom_call.1} parent=39 // pred_check
          %p726 = pneg %p167
        $region58: #{tpu_custom_call.1} parent=39 // pred_check_branch
          %728 = sbr.rel (%p726) target = $region60
        $region59: #{tpu_custom_call.1} parent=39 // pred_region
          %s730 = ssub.s32 128, 128
          %731 = vsyncadd %s722, %s730
          %s732 = smul.addr %s26, 128
          %s733 = scalar_lea.hbm %s5, %s732
          %s735 = sshll.u32 %s725, 4
          %s736 = int_to_ptr.vmem [resolvable:$true] %s735
          %738 = dma.vmem_to_hbm [thread:$0]  %s736, 128, %s733, %s722
        $region60: #{tpu_custom_call.1} parent=39 // pred_fallthru
          _
      $region40: #{tpu_custom_call.1} parent=5 // pred_fallthru
        _
      %p739 = scmp.le.s32.totalorder 2, %s17
      // Predicated region
      $region61: #{tpu_custom_call.1} parent=5 // pred_check
        %p740 = pneg %p739
      $region62: #{tpu_custom_call.1} parent=5 // pred_check_branch
        %742 = sbr.rel (%p740) target = $region64
      $region63: #{tpu_custom_call.1} parent=5 // pred_region
        %s743 = ssub.s32 %s17, 2
        // Predicated region
        $region65: #{tpu_custom_call.1} parent=63 // pred_check
          %p744 = pneg %p173
        $region66: #{tpu_custom_call.1} parent=63 // pred_check_branch
          %746 = sbr.rel (%p744) target = $region68
        $region67: #{tpu_custom_call.1} parent=63 // pred_region
          %s747 = sand.u32 %s158, 1
          %s748 = scalar_lea.sflag [#allocation6], %s747
          %s749 = sand.u32 %s158, 1
          %s750 = smul.addr %s749, 8
          %s751 = scalar_lea.vmem [#allocation9], %s750
          %752 = dma.done %s748, 128
        $region68: #{tpu_custom_call.1} parent=63 // pred_fallthru
          _
      $region64: #{tpu_custom_call.1} parent=5 // pred_fallthru
        _
    $region6: #{tpu_custom_call.1} parent=1 // loop_footer
      %s21 = sadd.s32 1, %s17
    $region7: #{tpu_custom_call.1} parent=1 // loop_footer_branch
      %16 = sbr.rel target = $region3
    $region8: #{tpu_custom_call.1} parent=1 // loop_exit
      _
    %753 = vsyncpa [#allocation5], 1
    %s754 = scalar_lea.sflag [#allocation5], 1
    %755 = vsyncpa %s754, 1
    %756 = vsyncpa [#allocation8], 1
    %757 = vsyncpa [#allocation6], 1
    %s758 = scalar_lea.sflag [#allocation6], 1
    %759 = vsyncpa %s758, 1

</llo_original>
